<compile_context>
chip_gen: v7x
topology: tpu7x:2x2x1
jax: 0.10.0
libtpu: 0.0.40
codegen_flags: <defaults>
</compile_context>

<pallas_src>
import jax
import jax.numpy as jnp
from jax.experimental import pallas as pl
from jax.experimental.pallas import tpu as pltpu


# Logical layer sizes (from nn.Linear(16, 32) -> nn.Linear(32, 48)).
IN1, OUT1, OUT2 = 16, 32, 48

# Lane-dense packing: 8 batch rows per "dense" row.
ROWS_PER_DENSE = 8
DENSE_IN = ROWS_PER_DENSE * IN1    # 128
DENSE_H = ROWS_PER_DENSE * OUT1    # 256
DENSE_OUT = ROWS_PER_DENSE * OUT2  # 384


def _round_up(n, m):
    return ((n + m - 1) // m) * m


def _cdiv(n, m):
    return -(-n // m)


# ---------------------------------------------------------------------------
# Kernel: one lane-dense tile of the (reshaped) batch through both linears.
# ---------------------------------------------------------------------------
def mlp_quad_relu_kernel(x_ref, w1_ref, b1_ref, w2_ref, b2_ref, o_ref):
    # x_ref: (tbr, 128) dense tile (8 batch rows packed per dense row).
    h = jnp.dot(x_ref[...], w1_ref[...],
                preferred_element_type=jnp.float32) + b1_ref[...]
    y = jnp.dot(h, w2_ref[...],
                preferred_element_type=jnp.float32) + b2_ref[...]
    o_ref[...] = jnp.maximum(y, 0.0)


# ---------------------------------------------------------------------------
# One-time parameter packing: block-diagonal, lane-dense, with x4 folded in.
# ---------------------------------------------------------------------------
def pack_params(w1, b1, w2, b2):
    """w1:(16,32) b1:(32,) w2:(32,48) b2:(48,)  (x @ W convention)."""
    W1_bd = jnp.zeros((DENSE_IN, DENSE_H), jnp.float32)
    W2_bd = jnp.zeros((DENSE_H, DENSE_OUT), jnp.float32)
    for r in range(ROWS_PER_DENSE):
        W1_bd = W1_bd.at[r * IN1:(r + 1) * IN1, r * OUT1:(r + 1) * OUT1].set(w1)
        W2_bd = W2_bd.at[r * OUT1:(r + 1) * OUT1,
                         r * OUT2:(r + 1) * OUT2].set(4.0 * w2)
    b1_bd = jnp.tile(b1.reshape(1, OUT1), (1, ROWS_PER_DENSE))          # (1,256)
    b2_bd = jnp.tile(4.0 * b2.reshape(1, OUT2), (1, ROWS_PER_DENSE))    # (1,384)
    return W1_bd, b1_bd, W2_bd, b2_bd


def _choose_dense_tile(bd, tb):
    """Pick the dense-row tile (tbr, multiple of 8) and padded row count."""
    tbr_max = max(8, (min(tb, 2048) // ROWS_PER_DENSE // 8) * 8)
    if bd <= tbr_max:
        if bd >= 16:
            # Two ~equal tiles so the "parallel" axis feeds both v7x cores.
            tbr = _round_up(_cdiv(bd, 2), 8)
        else:
            tbr = _round_up(bd, 8)
    else:
        tbr = tbr_max
    return tbr, _round_up(bd, tbr)


def model_forward(x, packed, *, tb=2048, force_pallas=False):
    """relu(4 * linear2(linear1(x))) for x of shape (B, 16), fp32."""
    W1_bd, b1_bd, W2_bd, b2_bd = packed
    B = x.shape[0]
    assert x.shape[1] == IN1

    if B <= 64 and not force_pallas:
        # Launch + pipeline prologue dominates for tiny batches: fused XLA path.
        w1 = W1_bd[:IN1, :OUT1]
        b1 = b1_bd[:, :OUT1]
        w2x4 = W2_bd[:OUT1, :OUT2]     # already scaled by 4
        b2x4 = b2_bd[:, :OUT2]         # already scaled by 4
        return jnp.maximum((x @ w1 + b1) @ w2x4 + b2x4, 0.0)

    bd = _cdiv(B, ROWS_PER_DENSE)
    tbr, bd_pad = _choose_dense_tile(bd, tb)
    b_pad = bd_pad * ROWS_PER_DENSE
    if b_pad != B:
        x = jnp.pad(x, ((0, b_pad - B), (0, 0)))
    # Contiguous (free) reshape: 8 consecutive batch rows per 128-lane row.
    x_dense = x.reshape(bd_pad, DENSE_IN)

    out_dense = pl.pallas_call(
        mlp_quad_relu_kernel,
        out_shape=jax.ShapeDtypeStruct((bd_pad, DENSE_OUT), jnp.float32),
        grid=(bd_pad // tbr,),
        in_specs=[
            pl.BlockSpec((tbr, DENSE_IN), lambda i: (i, 0)),
            # Grid-invariant full-block params: DMA'd once, stay VMEM-resident.
            pl.BlockSpec((DENSE_IN, DENSE_H), lambda i: (0, 0)),
            pl.BlockSpec((1, DENSE_H), lambda i: (0, 0)),
            pl.BlockSpec((DENSE_H, DENSE_OUT), lambda i: (0, 0)),
            pl.BlockSpec((1, DENSE_OUT), lambda i: (0, 0)),
        ],
        out_specs=pl.BlockSpec((tbr, DENSE_OUT), lambda i: (i, 0)),
        compiler_params=pltpu.CompilerParams(
            dimension_semantics=("parallel",),
        ),
    )(x_dense, W1_bd, b1_bd, W2_bd, b2_bd)

    out = out_dense.reshape(b_pad, OUT2)   # contiguous (free) reshape back
    return out[:B] if b_pad != B else out


def init_params(key):
    # Deterministic init mimicking nn.Linear's U(-1/sqrt(fan_in), 1/sqrt(fan_in)).
    k1, k2, k3, k4 = jax.random.split(key, 4)
    lim1 = 1.0 / jnp.sqrt(IN1)
    lim2 = 1.0 / jnp.sqrt(OUT1)
    w1 = jax.random.uniform(k1, (IN1, OUT1), jnp.float32, -lim1, lim1)
    b1 = jax.random.uniform(k2, (OUT1,), jnp.float32, -lim1, lim1)
    w2 = jax.random.uniform(k3, (OUT1, OUT2), jnp.float32, -lim2, lim2)
    b2 = jax.random.uniform(k4, (OUT2,), jnp.float32, -lim2, lim2)
    return w1, b1, w2, b2


def ref_forward(x, w1, b1, w2, b2):
    # Plain-JAX reference with the original module's op ordering.
    h = x @ w1 + b1
    y = h @ w2 + b2
    return jnp.maximum(y + y + y + y, 0.0)


if __name__ == "__main__":
    key = jax.random.PRNGKey(0)
    kx, kb, kc, kp = jax.random.split(key, 4)
    w1, b1, w2, b2 = init_params(kp)
    packed = pack_params(w1, b1, w2, b2)

    # 1) Original module shape (1, 16): XLA small-batch path and the forced
    #    Pallas path (exercises padding / single-tile edge case).
    x1 = jax.random.normal(kx, (1, IN1), jnp.float32)
    ref1 = ref_forward(x1, w1, b1, w2, b2)
    out1_xla = model_forward(x1, packed)
    out1_pl = model_forward(x1, packed, force_pallas=True)
    jax.block_until_ready((out1_xla, out1_pl))
    assert out1_pl.shape == (1, OUT2)
    assert jnp.allclose(out1_xla, ref1, atol=1e-5, rtol=1e-5)
    assert jnp.allclose(out1_pl, ref1, atol=1e-5, rtol=1e-5)

    # 2) Batched Pallas path: two lane-dense tiles (both v7x cores busy).
    xB = jax.random.normal(kb, (1024, IN1), jnp.float32)
    outB = model_forward(xB, packed)
    jax.block_until_ready(outB)
    refB = ref_forward(xB, w1, b1, w2, b2)
    assert outB.shape == (1024, OUT2)
    assert jnp.allclose(outB, refB, atol=1e-5, rtol=1e-5)

    # 3) Ragged batch (not a multiple of 8): exercises pad + un-pad.
    xC = jax.random.normal(kc, (300, IN1), jnp.float32)
    outC = model_forward(xC, packed)
    jax.block_until_ready(outC)
    refC = ref_forward(xC, w1, b1, w2, b2)
    assert outC.shape == (300, OUT2)
    assert jnp.allclose(outC, refC, atol=1e-5, rtol=1e-5)

    print("KERNEL_OK")
</pallas_src>

<mosaic_0001>
module attributes {stable_mosaic.version = 11 : i64} {
  func.func @mlp_quad_relu_kernel(%arg0: i32, %arg1: memref<8x128xf32, #tpu.memory_space<vmem>>, %arg2: memref<128x256xf32, #tpu.memory_space<vmem>>, %arg3: memref<1x256xf32, #tpu.memory_space<vmem>>, %arg4: memref<256x384xf32, #tpu.memory_space<vmem>>, %arg5: memref<1x384xf32, #tpu.memory_space<vmem>>, %arg6: memref<8x384xf32, #tpu.memory_space<vmem>>) attributes {dimension_semantics = [#tpu.dimension_semantics<parallel>], iteration_bounds = array<i64: 1>, scalar_prefetch = 0 : i64, scratch_operands = 0 : i64, tpu.core_type = #tpu.core_type<tc>, window_params = [{transform_indices = @transform_0, window_bounds = array<i64: 8, 128>}, {pipeline_mode = #tpu.pipeline_mode<synchronous>, transform_indices = @transform_1, window_bounds = array<i64: 128, 256>}, {pipeline_mode = #tpu.pipeline_mode<synchronous>, transform_indices = @transform_2, window_bounds = array<i64: 1, 256>}, {pipeline_mode = #tpu.pipeline_mode<synchronous>, transform_indices = @transform_3, window_bounds = array<i64: 256, 384>}, {pipeline_mode = #tpu.pipeline_mode<synchronous>, transform_indices = @transform_4, window_bounds = array<i64: 1, 384>}, {transform_indices = @transform_5, window_bounds = array<i64: 8, 384>}]} {
    %c0 = arith.constant 0 : index
    %c0_0 = arith.constant 0 : index
    %0 = vector.load %arg1[%c0, %c0_0] : memref<8x128xf32, #tpu.memory_space<vmem>>, vector<8x128xf32>
    %c0_1 = arith.constant 0 : index
    %c0_2 = arith.constant 0 : index
    %1 = vector.load %arg2[%c0_1, %c0_2] : memref<128x256xf32, #tpu.memory_space<vmem>>, vector<128x256xf32>
    %cst = arith.constant dense<0.000000e+00> : vector<8x256xf32>
    %2 = tpu.matmul %0, %1, %cst {dimension_numbers = #tpu.dot_dimension_numbers<[1], [0], [0], [1], [0, 0, 1, 1], [], []>} : vector<8x128xf32>, vector<128x256xf32>, vector<8x256xf32> -> vector<8x256xf32>
    %c0_3 = arith.constant 0 : index
    %c0_4 = arith.constant 0 : index
    %3 = vector.load %arg3[%c0_3, %c0_4] : memref<1x256xf32, #tpu.memory_space<vmem>>, vector<1x256xf32>
    %4 = vector.broadcast %3 : vector<1x256xf32> to vector<8x256xf32>
    %5 = arith.addf %2, %4 : vector<8x256xf32>
    %c0_5 = arith.constant 0 : index
    %c0_6 = arith.constant 0 : index
    %6 = vector.load %arg4[%c0_5, %c0_6] : memref<256x384xf32, #tpu.memory_space<vmem>>, vector<256x384xf32>
    %cst_7 = arith.constant dense<0.000000e+00> : vector<8x384xf32>
    %7 = tpu.matmul %5, %6, %cst_7 {dimension_numbers = #tpu.dot_dimension_numbers<[1], [0], [0], [1], [0, 0, 1, 1], [], []>} : vector<8x256xf32>, vector<256x384xf32>, vector<8x384xf32> -> vector<8x384xf32>
    %c0_8 = arith.constant 0 : index
    %c0_9 = arith.constant 0 : index
    %8 = vector.load %arg5[%c0_8, %c0_9] : memref<1x384xf32, #tpu.memory_space<vmem>>, vector<1x384xf32>
    %9 = vector.broadcast %8 : vector<1x384xf32> to vector<8x384xf32>
    %10 = arith.addf %7, %9 : vector<8x384xf32>
    %cst_10 = arith.constant 0.000000e+00 : f32
    %11 = vector.broadcast %cst_10 : f32 to vector<8x384xf32>
    %12 = arith.maximumf %10, %11 : vector<8x384xf32>
    %c0_11 = arith.constant 0 : index
    %c0_12 = arith.constant 0 : index
    %13 = vector.load %arg6[%c0_11, %c0_12] : memref<8x384xf32, #tpu.memory_space<vmem>>, vector<8x384xf32>
    tpu.vector_store %arg6[%c0_11, %c0_12], %12 {strides = array<i32>} : memref<8x384xf32, #tpu.memory_space<vmem>>, vector<8x384xf32>,
    return
  }
  func.func @transform_0(%arg0: i32) -> (i32, i32) {
    %c0_i32 = arith.constant 0 : i32
    %c0_i32_0 = arith.constant 0 : i32
    return %arg0, %c0_i32 : i32, i32
  }
  func.func @transform_1(%arg0: i32) -> (i32, i32) {
    %c0_i32 = arith.constant 0 : i32
    %c0_i32_0 = arith.constant 0 : i32
    %c0_i32_1 = arith.constant 0 : i32
    return %c0_i32, %c0_i32_0 : i32, i32
  }
  func.func @transform_2(%arg0: i32) -> (i32, i32) {
    %c0_i32 = arith.constant 0 : i32
    %c0_i32_0 = arith.constant 0 : i32
    %c0_i32_1 = arith.constant 0 : i32
    return %c0_i32, %c0_i32_0 : i32, i32
  }
  func.func @transform_3(%arg0: i32) -> (i32, i32) {
    %c0_i32 = arith.constant 0 : i32
    %c0_i32_0 = arith.constant 0 : i32
    %c0_i32_1 = arith.constant 0 : i32
    return %c0_i32, %c0_i32_0 : i32, i32
  }
  func.func @transform_4(%arg0: i32) -> (i32, i32) {
    %c0_i32 = arith.constant 0 : i32
    %c0_i32_0 = arith.constant 0 : i32
    %c0_i32_1 = arith.constant 0 : i32
    return %c0_i32, %c0_i32_0 : i32, i32
  }
  func.func @transform_5(%arg0: i32) -> (i32, i32) {
    %c0_i32 = arith.constant 0 : i32
    %c0_i32_0 = arith.constant 0 : i32
    return %arg0, %c0_i32 : i32, i32
  }
}

</mosaic_0001>

<llo_original>
// kernel: tpu_custom_call.1
$region0: #{tpu_custom_call.1}
  #allocation0 [shape = 'u32[]', space=smem, size = 0x4, offset = 0x4, fixed_abs, tag = 'smem constant byte address 0x4 - core index']
  #allocation1 [shape = 'u32[144,128]{1,0:T(1,128)}', space=vmem, size = 0x12000, scoped, tag = 'internal scratch']
  %s0 = inlined_call_operand.hbm [shape: f32[8,128], index: 0, kind: input, shape index: {}]
  %s1 = inlined_call_operand.hbm [shape: f32[128,256], index: 1, kind: input, shape index: {}]
  %s2 = inlined_call_operand.vmem [shape: f32[1,256], index: 2, kind: input, shape index: {}]
  %s3 = inlined_call_operand.hbm [shape: f32[256,384], index: 3, kind: input, shape index: {}]
  %s4 = inlined_call_operand.vmem [shape: f32[1,384], index: 4, kind: input, shape index: {}]
  %s5 = inlined_call_operand.hbm [shape: f32[8,384], index: 5, kind: output, shape index: {}]
  %s6 = sld [smem:[#allocation0]]
  $region42: #{tpu_custom_call.1} parent=0
    _
  %s8 = ssub.s32 1, %s6
  %s9 = scalar_select 0, %s8, %s6
  $region1: #{tpu_custom_call.1} parent=0
    #allocation2 [shape = 'u8[4096]{0}', space=vmem, size = 0x1000, scoped, tag = 'input window, operand 0, single buffered']
    #allocation3 [shape = 's32[1]{0}', space=sflag, size = 0x4, scoped, tag = 'scoped memory for tpu_custom_call.1']
    #allocation4 [shape = 's32[1]{0}', space=sflag, size = 0x4, scoped, tag = 'scoped memory for tpu_custom_call.1']
    #allocation5 [shape = 'u8[131072]{0}', space=vmem, size = 0x20000, scoped, tag = 'input window, operand 1, single buffered']
    #allocation6 [shape = 's32[1]{0}', space=sflag, size = 0x4, scoped, tag = 'scoped memory for tpu_custom_call.1']
    #allocation7 [shape = 'u8[393216]{0}', space=vmem, size = 0x60000, scoped, tag = 'input window, operand 3, single buffered']
    #allocation8 [shape = 'u8[12288]{0}', space=vmem, size = 0x3000, scoped, tag = 'output window, operand 0, single buffered']
    %10 = vsyncpa [#allocation3], 0
    %11 = vsyncpa [#allocation6], 0
    %12 = vsyncpa [#allocation4], 0
    // Predicated region
    $region2: #{tpu_custom_call.1} parent=1 // pred_check
      _
    $region3: #{tpu_custom_call.1} parent=1 // pred_check_branch
      %14 = sbr.rel (0) target = $region5
    $region4: #{tpu_custom_call.1} parent=1 // pred_region
      %s16 = ssub.s32 128, 128
      %17 = vsyncadd [#allocation3], %s16
      %s19 = sshll.u32 [#allocation2], 4
      %s20 = int_to_ptr.vmem [resolvable:$true] %s19
      %22 = dma.hbm_to_vmem [thread:$0]  %s0, 128, %s20, [#allocation3]
    $region5: #{tpu_custom_call.1} parent=1 // pred_fallthru
      _
    // Predicated region
    $region6: #{tpu_custom_call.1} parent=1 // pred_check
      _
    $region7: #{tpu_custom_call.1} parent=1 // pred_check_branch
      %24 = sbr.rel (0) target = $region9
    $region8: #{tpu_custom_call.1} parent=1 // pred_region
      %s26 = ssub.s32 4096, 4096
      %27 = vsyncadd [#allocation6], %s26
      %s28 = sshll.u32 [#allocation5], 4
      %s29 = int_to_ptr.vmem [resolvable:$true] %s28
      %34 = dma.hbm_to_vmem [thread:$0]  %s1, 4096, %s29, [#allocation6], 256, 256, 16
    $region9: #{tpu_custom_call.1} parent=1 // pred_fallthru
      _
    // Predicated region
    $region10: #{tpu_custom_call.1} parent=1 // pred_check
      _
    $region11: #{tpu_custom_call.1} parent=1 // pred_check_branch
      %36 = sbr.rel (0) target = $region13
    $region12: #{tpu_custom_call.1} parent=1 // pred_region
      _
    $region13: #{tpu_custom_call.1} parent=1 // pred_fallthru
      _
    // Predicated region
    $region14: #{tpu_custom_call.1} parent=1 // pred_check
      _
    $region15: #{tpu_custom_call.1} parent=1 // pred_check_branch
      %38 = sbr.rel (0) target = $region17
    $region16: #{tpu_custom_call.1} parent=1 // pred_region
      %s40 = ssub.s32 12288, 12288
      %41 = vsyncadd [#allocation6], %s40
      %s42 = sshll.u32 [#allocation7], 4
      %s43 = int_to_ptr.vmem [resolvable:$true] %s42
      %48 = dma.hbm_to_vmem [thread:$0]  %s3, 12288, %s43, [#allocation6], 384, 384, 24
    $region17: #{tpu_custom_call.1} parent=1 // pred_fallthru
      _
    // Predicated region
    $region18: #{tpu_custom_call.1} parent=1 // pred_check
      _
    $region19: #{tpu_custom_call.1} parent=1 // pred_check_branch
      %50 = sbr.rel (0) target = $region21
    $region20: #{tpu_custom_call.1} parent=1 // pred_region
      _
    $region21: #{tpu_custom_call.1} parent=1 // pred_fallthru
      _
    // Predicated region
    $region22: #{tpu_custom_call.1} parent=1 // pred_check
      _
    $region23: #{tpu_custom_call.1} parent=1 // pred_check_branch
      %52 = sbr.rel (0) target = $region25
    $region24: #{tpu_custom_call.1} parent=1 // pred_region
      %53 = dma.done [#allocation3], 128
    $region25: #{tpu_custom_call.1} parent=1 // pred_fallthru
      _
    // Predicated region
    $region26: #{tpu_custom_call.1} parent=1 // pred_check
      _
    $region27: #{tpu_custom_call.1} parent=1 // pred_check_branch
      %55 = sbr.rel (0) target = $region29
    $region28: #{tpu_custom_call.1} parent=1 // pred_region
      %56 = dma.done [#allocation6], 4096
    $region29: #{tpu_custom_call.1} parent=1 // pred_fallthru
      _
    // Predicated region
    $region30: #{tpu_custom_call.1} parent=1 // pred_check
      _
    $region31: #{tpu_custom_call.1} parent=1 // pred_check_branch
      %58 = sbr.rel (0) target = $region33
    $region32: #{tpu_custom_call.1} parent=1 // pred_region
      %59 = dma.done [#allocation6], 12288
    $region33: #{tpu_custom_call.1} parent=1 // pred_fallthru
      _
    %v60 = vld [vmem:[#allocation2] sm:$0xff]
    %v61 = vld [vmem:[#allocation5] sm:$0xff]
    %v62 = vld [vmem:[#allocation5 + $0x8] sm:$0xff]
    %v63 = vld [vmem:[#allocation5 + $0x10] sm:$0xff]
    %v64 = vld [vmem:[#allocation5 + $0x18] sm:$0xff]
    %v65 = vld [vmem:[#allocation5 + $0x20] sm:$0xff]
    %v66 = vld [vmem:[#allocation5 + $0x28] sm:$0xff]
    %v67 = vld [vmem:[#allocation5 + $0x30] sm:$0xff]
    %v68 = vld [vmem:[#allocation5 + $0x38] sm:$0xff]
    %v69 = vld [vmem:[#allocation5 + $0x40] sm:$0xff]
    %v70 = vld [vmem:[#allocation5 + $0x48] sm:$0xff]
    %v71 = vld [vmem:[#allocation5 + $0x50] sm:$0xff]
    %v72 = vld [vmem:[#allocation5 + $0x58] sm:$0xff]
    %v73 = vld [vmem:[#allocation5 + $0x60] sm:$0xff]
    %v74 = vld [vmem:[#allocation5 + $0x68] sm:$0xff]
    %v75 = vld [vmem:[#allocation5 + $0x70] sm:$0xff]
    %v76 = vld [vmem:[#allocation5 + $0x78] sm:$0xff]
    %v77 = vld [vmem:[#allocation5 + $0x80] sm:$0xff]
    %v78 = vld [vmem:[#allocation5 + $0x88] sm:$0xff]
    %v79 = vld [vmem:[#allocation5 + $0x90] sm:$0xff]
    %v80 = vld [vmem:[#allocation5 + $0x98] sm:$0xff]
    %v81 = vld [vmem:[#allocation5 + $0xa0] sm:$0xff]
    %v82 = vld [vmem:[#allocation5 + $0xa8] sm:$0xff]
    %v83 = vld [vmem:[#allocation5 + $0xb0] sm:$0xff]
    %v84 = vld [vmem:[#allocation5 + $0xb8] sm:$0xff]
    %v85 = vld [vmem:[#allocation5 + $0xc0] sm:$0xff]
    %v86 = vld [vmem:[#allocation5 + $0xc8] sm:$0xff]
    %v87 = vld [vmem:[#allocation5 + $0xd0] sm:$0xff]
    %v88 = vld [vmem:[#allocation5 + $0xd8] sm:$0xff]
    %v89 = vld [vmem:[#allocation5 + $0xe0] sm:$0xff]
    %v90 = vld [vmem:[#allocation5 + $0xe8] sm:$0xff]
    %v91 = vld [vmem:[#allocation5 + $0xf0] sm:$0xff]
    %v92 = vld [vmem:[#allocation5 + $0xf8] sm:$0xff]
    %v93 = vld [vmem:[%s2] sm:$0x3]
    %v95 = vlaneseq
    %v96 = vshrl.u32 %v95, 7
    %v97 = vsub.s32 0, %v96
    %v98 = vrot.slane %v93, %v97
    %v99 = vlaneseq
    %v100 = vshrl.u32 %v99, 7
    %v101 = vsub.s32 1, %v100
    %v102 = vrot.slane %v93, %v101
    %105 = vmatprep.subr.mxu0 %v62
    %106 = vmatpush1.msra.mxu0 %v61
    %107 = vmatprep.subr.mxu0 %v64
    %108 = vmatpush1.msra.mxu0 %v63
    %109 = vmatprep.subr.mxu0 %v66
    %110 = vmatpush1.msra.mxu0 %v65
    %111 = vmatprep.subr.mxu0 %v68
    %112 = vmatpush1.msra.mxu0 %v67
    %113 = vmatprep.subr.mxu0 %v70
    %114 = vmatpush1.msra.mxu0 %v69
    %115 = vmatprep.subr.mxu0 %v72
    %116 = vmatpush1.msra.mxu0 %v71
    %117 = vmatprep.subr.mxu0 %v74
    %118 = vmatpush1.msra.mxu0 %v73
    %119 = vmatprep.subr.mxu0 %v76
    %120 = vmatpush1.msra.mxu0 %v75
    %121 = vmatprep.subr.mxu0 %v78
    %122 = vmatpush1.msra.mxu0 %v77
    %123 = vmatprep.subr.mxu0 %v80
    %124 = vmatpush1.msra.mxu0 %v79
    %125 = vmatprep.subr.mxu0 %v82
    %126 = vmatpush1.msra.mxu0 %v81
    %127 = vmatprep.subr.mxu0 %v84
    %128 = vmatpush1.msra.mxu0 %v83
    %129 = vmatprep.subr.mxu0 %v86
    %130 = vmatpush1.msra.mxu0 %v85
    %131 = vmatprep.subr.mxu0 %v88
    %132 = vmatpush1.msra.mxu0 %v87
    %133 = vmatprep.subr.mxu0 %v90
    %134 = vmatpush1.msra.mxu0 %v89
    %135 = vmatprep.subr.mxu0 %v92
    %136 = vmatpush1.msra.mxu0 %v91
    %137 = vmatprep.subr.mxu0 0.0
    %138 = vmatpush1.msra.mxu0 0.0
    %139 = vmatprep.subr.mxu0 0.0
    %140 = vmatpush1.msra.mxu0 0.0
    %141 = vmatprep.subr.mxu0 0.0
    %142 = vmatpush1.msra.mxu0 0.0
    %143 = vmatprep.subr.mxu0 0.0
    %144 = vmatpush1.msra.mxu0 0.0
    %145 = vmatprep.subr.mxu0 0.0
    %146 = vmatpush1.msra.mxu0 0.0
    %147 = vmatprep.subr.mxu0 0.0
    %148 = vmatpush1.msra.mxu0 0.0
    %149 = vmatprep.subr.mxu0 0.0
    %150 = vmatpush1.msra.mxu0 0.0
    %151 = vmatprep.subr.mxu0 0.0
    %152 = vmatpush1.msra.mxu0 0.0
    %153 = vmatprep.subr.mxu0 0.0
    %154 = vmatpush1.msra.mxu0 0.0
    %155 = vmatprep.subr.mxu0 0.0
    %156 = vmatpush1.msra.mxu0 0.0
    %157 = vmatprep.subr.mxu0 0.0
    %158 = vmatpush1.msra.mxu0 0.0
    %159 = vmatprep.subr.mxu0 0.0
    %160 = vmatpush1.msra.mxu0 0.0
    %161 = vmatprep.subr.mxu0 0.0
    %162 = vmatpush1.msra.mxu0 0.0
    %163 = vmatprep.subr.mxu0 0.0
    %164 = vmatpush1.msra.mxu0 0.0
    %165 = vmatprep.subr.mxu0 0.0
    %166 = vmatpush1.msra.mxu0 0.0
    %167 = vmatprep.subr.mxu0 0.0
    %168 = vmatpush1.msra.mxu0 0.0
    %169 = vmatprep.mubr.f32.mxu0 0.0
    %170 = vmatmul.mubr.f32.gmra.mrb[0].mxu0 %v60
    %v171 = vpop.f32.mrb[0].mxu0
    %v172 = vadd.f32 %v98, %v171
    %v173 = vpop.f32.mrb[0].mxu0
    %v174 = vadd.f32 %v102, %v173
    %175 = vdwg.mxu0
    %v176 = vld [vmem:[#allocation7] sm:$0xff]
    %v177 = vld [vmem:[#allocation7 + $0x8] sm:$0xff]
    %v178 = vld [vmem:[#allocation7 + $0x10] sm:$0xff]
    %v179 = vld [vmem:[#allocation7 + $0x18] sm:$0xff]
    %v180 = vld [vmem:[#allocation7 + $0x20] sm:$0xff]
    %v181 = vld [vmem:[#allocation7 + $0x28] sm:$0xff]
    %v182 = vld [vmem:[#allocation7 + $0x30] sm:$0xff]
    %v183 = vld [vmem:[#allocation7 + $0x38] sm:$0xff]
    %v184 = vld [vmem:[#allocation7 + $0x40] sm:$0xff]
    %v185 = vld [vmem:[#allocation7 + $0x48] sm:$0xff]
    %v186 = vld [vmem:[#allocation7 + $0x50] sm:$0xff]
    %v187 = vld [vmem:[#allocation7 + $0x58] sm:$0xff]
    %v188 = vld [vmem:[#allocation7 + $0x60] sm:$0xff]
    %v189 = vld [vmem:[#allocation7 + $0x68] sm:$0xff]
    %v190 = vld [vmem:[#allocation7 + $0x70] sm:$0xff]
    %v191 = vld [vmem:[#allocation7 + $0x78] sm:$0xff]
    %v192 = vld [vmem:[#allocation7 + $0x80] sm:$0xff]
    %v193 = vld [vmem:[#allocation7 + $0x88] sm:$0xff]
    %v194 = vld [vmem:[#allocation7 + $0x90] sm:$0xff]
    %v195 = vld [vmem:[#allocation7 + $0x98] sm:$0xff]
    %v196 = vld [vmem:[#allocation7 + $0xa0] sm:$0xff]
    %v197 = vld [vmem:[#allocation7 + $0xa8] sm:$0xff]
    %v198 = vld [vmem:[#allocation7 + $0xb0] sm:$0xff]
    %v199 = vld [vmem:[#allocation7 + $0xb8] sm:$0xff]
    %v200 = vld [vmem:[#allocation7 + $0xc0] sm:$0xff]
    %v201 = vld [vmem:[#allocation7 + $0xc8] sm:$0xff]
    %v202 = vld [vmem:[#allocation7 + $0xd0] sm:$0xff]
    %v203 = vld [vmem:[#allocation7 + $0xd8] sm:$0xff]
    %v204 = vld [vmem:[#allocation7 + $0xe0] sm:$0xff]
    %v205 = vld [vmem:[#allocation7 + $0xe8] sm:$0xff]
    %v206 = vld [vmem:[#allocation7 + $0xf0] sm:$0xff]
    %v207 = vld [vmem:[#allocation7 + $0xf8] sm:$0xff]
    %v208 = vld [vmem:[#allocation7 + $0x100] sm:$0xff]
    %v209 = vld [vmem:[#allocation7 + $0x108] sm:$0xff]
    %v210 = vld [vmem:[#allocation7 + $0x110] sm:$0xff]
    %v211 = vld [vmem:[#allocation7 + $0x118] sm:$0xff]
    %v212 = vld [vmem:[#allocation7 + $0x120] sm:$0xff]
    %v213 = vld [vmem:[#allocation7 + $0x128] sm:$0xff]
    %v214 = vld [vmem:[#allocation7 + $0x130] sm:$0xff]
    %v215 = vld [vmem:[#allocation7 + $0x138] sm:$0xff]
    %v216 = vld [vmem:[#allocation7 + $0x140] sm:$0xff]
    %v217 = vld [vmem:[#allocation7 + $0x148] sm:$0xff]
    %v218 = vld [vmem:[#allocation7 + $0x150] sm:$0xff]
    %v219 = vld [vmem:[#allocation7 + $0x158] sm:$0xff]
    %v220 = vld [vmem:[#allocation7 + $0x160] sm:$0xff]
    %v221 = vld [vmem:[#allocation7 + $0x168] sm:$0xff]
    %v222 = vld [vmem:[#allocation7 + $0x170] sm:$0xff]
    %v223 = vld [vmem:[#allocation7 + $0x178] sm:$0xff]
    %v224 = vld [vmem:[#allocation7 + $0x180] sm:$0xff]
    %v225 = vld [vmem:[#allocation7 + $0x188] sm:$0xff]
    %v226 = vld [vmem:[#allocation7 + $0x190] sm:$0xff]
    %v227 = vld [vmem:[#allocation7 + $0x198] sm:$0xff]
    %v228 = vld [vmem:[#allocation7 + $0x1a0] sm:$0xff]
    %v229 = vld [vmem:[#allocation7 + $0x1a8] sm:$0xff]
    %v230 = vld [vmem:[#allocation7 + $0x1b0] sm:$0xff]
    %v231 = vld [vmem:[#allocation7 + $0x1b8] sm:$0xff]
    %v232 = vld [vmem:[#allocation7 + $0x1c0] sm:$0xff]
    %v233 = vld [vmem:[#allocation7 + $0x1c8] sm:$0xff]
    %v234 = vld [vmem:[#allocation7 + $0x1d0] sm:$0xff]
    %v235 = vld [vmem:[#allocation7 + $0x1d8] sm:$0xff]
    %v236 = vld [vmem:[#allocation7 + $0x1e0] sm:$0xff]
    %v237 = vld [vmem:[#allocation7 + $0x1e8] sm:$0xff]
    %v238 = vld [vmem:[#allocation7 + $0x1f0] sm:$0xff]
    %v239 = vld [vmem:[#allocation7 + $0x1f8] sm:$0xff]
    %v240 = vld [vmem:[#allocation7 + $0x200] sm:$0xff]
    %v241 = vld [vmem:[#allocation7 + $0x208] sm:$0xff]
    %v242 = vld [vmem:[#allocation7 + $0x210] sm:$0xff]
    %v243 = vld [vmem:[#allocation7 + $0x218] sm:$0xff]
    %v244 = vld [vmem:[#allocation7 + $0x220] sm:$0xff]
    %v245 = vld [vmem:[#allocation7 + $0x228] sm:$0xff]
    %v246 = vld [vmem:[#allocation7 + $0x230] sm:$0xff]
    %v247 = vld [vmem:[#allocation7 + $0x238] sm:$0xff]
    %v248 = vld [vmem:[#allocation7 + $0x240] sm:$0xff]
    %v249 = vld [vmem:[#allocation7 + $0x248] sm:$0xff]
    %v250 = vld [vmem:[#allocation7 + $0x250] sm:$0xff]
    %v251 = vld [vmem:[#allocation7 + $0x258] sm:$0xff]
    %v252 = vld [vmem:[#allocation7 + $0x260] sm:$0xff]
    %v253 = vld [vmem:[#allocation7 + $0x268] sm:$0xff]
    %v254 = vld [vmem:[#allocation7 + $0x270] sm:$0xff]
    %v255 = vld [vmem:[#allocation7 + $0x278] sm:$0xff]
    %v256 = vld [vmem:[#allocation7 + $0x280] sm:$0xff]
    %v257 = vld [vmem:[#allocation7 + $0x288] sm:$0xff]
    %v258 = vld [vmem:[#allocation7 + $0x290] sm:$0xff]
    %v259 = vld [vmem:[#allocation7 + $0x298] sm:$0xff]
    %v260 = vld [vmem:[#allocation7 + $0x2a0] sm:$0xff]
    %v261 = vld [vmem:[#allocation7 + $0x2a8] sm:$0xff]
    %v262 = vld [vmem:[#allocation7 + $0x2b0] sm:$0xff]
    %v263 = vld [vmem:[#allocation7 + $0x2b8] sm:$0xff]
    %v264 = vld [vmem:[#allocation7 + $0x2c0] sm:$0xff]
    %v265 = vld [vmem:[#allocation7 + $0x2c8] sm:$0xff]
    %v266 = vld [vmem:[#allocation7 + $0x2d0] sm:$0xff]
    %v267 = vld [vmem:[#allocation7 + $0x2d8] sm:$0xff]
    %v268 = vld [vmem:[#allocation7 + $0x2e0] sm:$0xff]
    %v269 = vld [vmem:[#allocation7 + $0x2e8] sm:$0xff]
    %v270 = vld [vmem:[#allocation7 + $0x2f0] sm:$0xff]
    %v271 = vld [vmem:[#allocation7 + $0x2f8] sm:$0xff]
    %v272 = vld [vmem:[%s4] sm:$0x7]
    %v274 = vlaneseq
    %v275 = vshrl.u32 %v274, 7
    %v276 = vsub.s32 0, %v275
    %v277 = vrot.slane %v272, %v276
    %v278 = vlaneseq
    %v279 = vshrl.u32 %v278, 7
    %v280 = vsub.s32 1, %v279
    %v281 = vrot.slane %v272, %v280
    %v282 = vlaneseq
    %v283 = vshrl.u32 %v282, 7
    %v284 = vsub.s32 2, %v283
    %v285 = vrot.slane %v272, %v284
    %289 = vmatprep.subr.mxu0 %v177
    %290 = vmatpush1.msra.mxu0 %v176
    %291 = vmatprep.subr.mxu0 %v180
    %292 = vmatpush1.msra.mxu0 %v179
    %293 = vmatprep.subr.mxu0 %v183
    %294 = vmatpush1.msra.mxu0 %v182
    %295 = vmatprep.subr.mxu0 %v186
    %296 = vmatpush1.msra.mxu0 %v185
    %297 = vmatprep.subr.mxu0 %v189
    %298 = vmatpush1.msra.mxu0 %v188
    %299 = vmatprep.subr.mxu0 %v192
    %300 = vmatpush1.msra.mxu0 %v191
    %301 = vmatprep.subr.mxu0 %v195
    %302 = vmatpush1.msra.mxu0 %v194
    %303 = vmatprep.subr.mxu0 %v198
    %304 = vmatpush1.msra.mxu0 %v197
    %305 = vmatprep.subr.mxu0 %v201
    %306 = vmatpush1.msra.mxu0 %v200
    %307 = vmatprep.subr.mxu0 %v204
    %308 = vmatpush1.msra.mxu0 %v203
    %309 = vmatprep.subr.mxu0 %v207
    %310 = vmatpush1.msra.mxu0 %v206
    %311 = vmatprep.subr.mxu0 %v210
    %312 = vmatpush1.msra.mxu0 %v209
    %313 = vmatprep.subr.mxu0 %v213
    %314 = vmatpush1.msra.mxu0 %v212
    %315 = vmatprep.subr.mxu0 %v216
    %316 = vmatpush1.msra.mxu0 %v215
    %317 = vmatprep.subr.mxu0 %v219
    %318 = vmatpush1.msra.mxu0 %v218
    %319 = vmatprep.subr.mxu0 %v222
    %320 = vmatpush1.msra.mxu0 %v221
    %321 = vmatprep.subr.mxu0 %v225
    %322 = vmatpush1.msra.mxu0 %v224
    %323 = vmatprep.subr.mxu0 %v228
    %324 = vmatpush1.msra.mxu0 %v227
    %325 = vmatprep.subr.mxu0 %v231
    %326 = vmatpush1.msra.mxu0 %v230
    %327 = vmatprep.subr.mxu0 %v234
    %328 = vmatpush1.msra.mxu0 %v233
    %329 = vmatprep.subr.mxu0 %v237
    %330 = vmatpush1.msra.mxu0 %v236
    %331 = vmatprep.subr.mxu0 %v240
    %332 = vmatpush1.msra.mxu0 %v239
    %333 = vmatprep.subr.mxu0 %v243
    %334 = vmatpush1.msra.mxu0 %v242
    %335 = vmatprep.subr.mxu0 %v246
    %336 = vmatpush1.msra.mxu0 %v245
    %337 = vmatprep.subr.mxu0 %v249
    %338 = vmatpush1.msra.mxu0 %v248
    %339 = vmatprep.subr.mxu0 %v252
    %340 = vmatpush1.msra.mxu0 %v251
    %341 = vmatprep.subr.mxu0 %v255
    %342 = vmatpush1.msra.mxu0 %v254
    %343 = vmatprep.subr.mxu0 %v258
    %344 = vmatpush1.msra.mxu0 %v257
    %345 = vmatprep.subr.mxu0 %v261
    %346 = vmatpush1.msra.mxu0 %v260
    %347 = vmatprep.subr.mxu0 %v264
    %348 = vmatpush1.msra.mxu0 %v263
    %349 = vmatprep.subr.mxu0 %v267
    %350 = vmatpush1.msra.mxu0 %v266
    %351 = vmatprep.subr.mxu0 %v270
    %352 = vmatpush1.msra.mxu0 %v269
    %353 = vmatprep.mubr.f32.mxu0 %v174
    %354 = vmatmul.mubr.f32.gmra.mrb[0].mxu0 %v172
    %v355 = vpop.f32.mrb[0].mxu0
    %v356 = vadd.f32 %v277, %v355
    %v357 = vpop.f32.mrb[0].mxu0
    %v358 = vadd.f32 %v281, %v357
    %359 = vdwg.mxu0
    %360 = vmatprep.subr.mxu0 0.0
    %361 = vmatpush1.msra.mxu0 %v178
    %362 = vmatprep.subr.mxu0 0.0
    %363 = vmatpush1.msra.mxu0 %v181
    %364 = vmatprep.subr.mxu0 0.0
    %365 = vmatpush1.msra.mxu0 %v184
    %366 = vmatprep.subr.mxu0 0.0
    %367 = vmatpush1.msra.mxu0 %v187
    %368 = vmatprep.subr.mxu0 0.0
    %369 = vmatpush1.msra.mxu0 %v190
    %370 = vmatprep.subr.mxu0 0.0
    %371 = vmatpush1.msra.mxu0 %v193
    %372 = vmatprep.subr.mxu0 0.0
    %373 = vmatpush1.msra.mxu0 %v196
    %374 = vmatprep.subr.mxu0 0.0
    %375 = vmatpush1.msra.mxu0 %v199
    %376 = vmatprep.subr.mxu0 0.0
    %377 = vmatpush1.msra.mxu0 %v202
    %378 = vmatprep.subr.mxu0 0.0
    %379 = vmatpush1.msra.mxu0 %v205
    %380 = vmatprep.subr.mxu0 0.0
    %381 = vmatpush1.msra.mxu0 %v208
    %382 = vmatprep.subr.mxu0 0.0
    %383 = vmatpush1.msra.mxu0 %v211
    %384 = vmatprep.subr.mxu0 0.0
    %385 = vmatpush1.msra.mxu0 %v214
    %386 = vmatprep.subr.mxu0 0.0
    %387 = vmatpush1.msra.mxu0 %v217
    %388 = vmatprep.subr.mxu0 0.0
    %389 = vmatpush1.msra.mxu0 %v220
    %390 = vmatprep.subr.mxu0 0.0
    %391 = vmatpush1.msra.mxu0 %v223
    %392 = vmatprep.subr.mxu0 0.0
    %393 = vmatpush1.msra.mxu0 %v226
    %394 = vmatprep.subr.mxu0 0.0
    %395 = vmatpush1.msra.mxu0 %v229
    %396 = vmatprep.subr.mxu0 0.0
    %397 = vmatpush1.msra.mxu0 %v232
    %398 = vmatprep.subr.mxu0 0.0
    %399 = vmatpush1.msra.mxu0 %v235
    %400 = vmatprep.subr.mxu0 0.0
    %401 = vmatpush1.msra.mxu0 %v238
    %402 = vmatprep.subr.mxu0 0.0
    %403 = vmatpush1.msra.mxu0 %v241
    %404 = vmatprep.subr.mxu0 0.0
    %405 = vmatpush1.msra.mxu0 %v244
    %406 = vmatprep.subr.mxu0 0.0
    %407 = vmatpush1.msra.mxu0 %v247
    %408 = vmatprep.subr.mxu0 0.0
    %409 = vmatpush1.msra.mxu0 %v250
    %410 = vmatprep.subr.mxu0 0.0
    %411 = vmatpush1.msra.mxu0 %v253
    %412 = vmatprep.subr.mxu0 0.0
    %413 = vmatpush1.msra.mxu0 %v256
    %414 = vmatprep.subr.mxu0 0.0
    %415 = vmatpush1.msra.mxu0 %v259
    %416 = vmatprep.subr.mxu0 0.0
    %417 = vmatpush1.msra.mxu0 %v262
    %418 = vmatprep.subr.mxu0 0.0
    %419 = vmatpush1.msra.mxu0 %v265
    %420 = vmatprep.subr.mxu0 0.0
    %421 = vmatpush1.msra.mxu0 %v268
    %422 = vmatprep.subr.mxu0 0.0
    %423 = vmatpush1.msra.mxu0 %v271
    %424 = vmatprep.mubr.f32.mxu0 %v174
    %425 = vmatmul.mubr.f32.gmra.mrb[0].mxu0 %v172
    %v426 = vpop.f32.mrb[0].mxu0
    %v427 = vadd.f32 %v285, %v426
    %v428 = vpop.f32.mrb[0].mxu0
    %429 = vdwg.mxu0
    %v430 = vmax.f32 %v356, 0.0
    %v431 = vmax.f32 %v358, 0.0
    %v432 = vmax.f32 %v427, 0.0
    %433 = vst [vmem:[#allocation8] sm:$0xff] %v430
    %434 = vst [vmem:[#allocation8 + $0x8] sm:$0xff] %v431
    %435 = vst [vmem:[#allocation8 + $0x10] sm:$0xff] %v432
    // Predicated region
    $region34: #{tpu_custom_call.1} parent=1 // pred_check
      _
    $region35: #{tpu_custom_call.1} parent=1 // pred_check_branch
      %437 = sbr.rel (0) target = $region37
    $region36: #{tpu_custom_call.1} parent=1 // pred_region
      %s439 = ssub.s32 384, 384
      %440 = vsyncadd [#allocation4], %s439
      %s442 = sshll.u32 [#allocation8], 4
      %s443 = int_to_ptr.vmem [resolvable:$true] %s442
      %445 = dma.vmem_to_hbm [thread:$0]  %s443, 384, %s5, [#allocation4]
    $region37: #{tpu_custom_call.1} parent=1 // pred_fallthru
      _
    // Predicated region
    $region38: #{tpu_custom_call.1} parent=1 // pred_check
      _
    $region39: #{tpu_custom_call.1} parent=1 // pred_check_branch
      %447 = sbr.rel (0) target = $region41
    $region40: #{tpu_custom_call.1} parent=1 // pred_region
      %448 = dma.done [#allocation4], 384
    $region41: #{tpu_custom_call.1} parent=1 // pred_fallthru
      _
    %449 = vsyncpa [#allocation3], 1
    %450 = vsyncpa [#allocation6], 1
    %451 = vsyncpa [#allocation4], 1

</llo_original>
